<compile_context>
chip_gen: v6e
topology: v6e:2x2x1
jax: 0.10.0
libtpu: 0.0.40
codegen_flags: <defaults>
</compile_context>

<pallas_src>
import jax
import jax.numpy as jnp
from jax import lax
from jax.experimental import pallas as pl
from jax.experimental.pallas import tpu as pltpu


def _round_up(n, m):
    return ((n + m - 1) // m) * m


def _mlp_kernel(x_ref, w1_ref, b1_ref, w2_ref, b2_ref, o_ref):
    # x_ref:  [tile_m, in]      (streamed per grid step)
    # w1_ref: [hidden, in]      (resident; PyTorch layout)
    # b1_ref: [1, hidden]
    # w2_ref: [out, hidden]     (resident; PyTorch layout)
    # b2_ref: [out, 1]
    # o_ref:  [out, tile_m]     (lane-dense: batch tile on lanes)
    x = x_ref[...]

    # linear1: x @ W1^T + b1   (contract the shared `in` dim of both operands)
    h = lax.dot_general(
        x, w1_ref[...],
        dimension_numbers=(((1,), (1,)), ((), ())),
        preferred_element_type=jnp.float32,
    ) + b1_ref[...]                                  # [tile_m, hidden]

    # relu1
    h = jnp.maximum(h, 0.0)

    # linear2, transposed orientation: out^T = W2 @ h^T  -> [out, tile_m]
    # (keeps the batch tile on the 128-lane axis for a dense store)
    out_t = lax.dot_general(
        w2_ref[...], h,
        dimension_numbers=(((1,), (1,)), ((), ())),
        preferred_element_type=jnp.float32,
    ) + b2_ref[...]                                  # [out, tile_m]

    o_ref[...] = out_t.astype(o_ref.dtype)


def deep_regression_forward(x, w1, b1, w2, b2, *, tile_m=512):
    """Fused Linear -> ReLU -> Linear forward pass.

    x:  [B, input_size] float32
    w1: [hidden, input] (PyTorch nn.Linear layout, used as-is)
    b1: [hidden]
    w2: [output, hidden]
    b2: [output]
    returns [B, output]
    """
    B, in_size = x.shape
    hidden = w1.shape[0]
    out_size = w2.shape[0]

    # Tile the batch axis: tile_m must be a multiple of 128 (lane-dense output
    # blocks) and divide the padded batch.
    tm = min(tile_m, _round_up(B, 128))
    b_pad = _round_up(B, tm)
    if b_pad != B:
        x = jnp.pad(x, ((0, b_pad - B), (0, 0)))

    b1_2d = b1.reshape(1, hidden)       # broadcast over rows inside the kernel
    b2_2d = b2.reshape(out_size, 1)     # broadcast over lanes inside the kernel

    grid = (b_pad // tm,)

    # NOTE: for large input/hidden sizes, casting x/w1 to bfloat16 at the dot
    # inputs (keeping f32 accumulation + f32 bias/ReLU) halves HBM traffic on
    # v5e/v6e; kept f32 here for exact parity at these toy sizes.
    out_t = pl.pallas_call(
        _mlp_kernel,
        out_shape=jax.ShapeDtypeStruct((out_size, b_pad), x.dtype),
        grid=grid,
        in_specs=[
            pl.BlockSpec((tm, in_size), lambda i: (i, 0)),       # x: streamed tiles
            pl.BlockSpec((hidden, in_size), lambda i: (0, 0)),   # w1: resident
            pl.BlockSpec((1, hidden), lambda i: (0, 0)),         # b1: resident
            pl.BlockSpec((out_size, hidden), lambda i: (0, 0)),  # w2: resident
            pl.BlockSpec((out_size, 1), lambda i: (0, 0)),       # b2: resident
        ],
        out_specs=pl.BlockSpec((out_size, tm), lambda i: (0, i)),
        compiler_params=pltpu.CompilerParams(
            dimension_semantics=("parallel",),
        ),
    )(x, w1, b1_2d, w2, b2_2d)

    # [out_size, b_pad] -> [B, out_size]; trivial reshape when out_size == 1.
    return out_t.T[:B]


def reference_forward(x, w1, b1, w2, b2):
    h = jnp.maximum(x @ w1.T + b1, 0.0)
    return h @ w2.T + b2


if __name__ == "__main__":
    input_size = 16
    hidden_size = 4
    output_size = 1
    batch = 1000  # not a multiple of the tile -> exercises padding + multi-step grid

    key = jax.random.PRNGKey(0)
    kx, k1, k2, k3, k4 = jax.random.split(key, 5)

    # Deterministic parameter init (mimics PyTorch's uniform(-1/sqrt(fan_in), ...)).
    bound1 = 1.0 / (input_size ** 0.5)
    bound2 = 1.0 / (hidden_size ** 0.5)
    w1 = jax.random.uniform(k1, (hidden_size, input_size), jnp.float32, -bound1, bound1)
    b1 = jax.random.uniform(k2, (hidden_size,), jnp.float32, -bound1, bound1)
    w2 = jax.random.uniform(k3, (output_size, hidden_size), jnp.float32, -bound2, bound2)
    b2 = jax.random.uniform(k4, (output_size,), jnp.float32, -bound2, bound2)

    x = jax.random.normal(kx, (batch, input_size), jnp.float32)

    out = deep_regression_forward(x, w1, b1, w2, b2, tile_m=512)
    out = jax.block_until_ready(out)

    ref = reference_forward(x, w1, b1, w2, b2)
    assert out.shape == (batch, output_size), out.shape
    assert jnp.allclose(out, ref, atol=1e-5, rtol=1e-5), "mismatch vs reference"

    print("KERNEL_OK")
</pallas_src>

<mosaic_0001>
module attributes {stable_mosaic.version = 11 : i64} {
  func.func @_mlp_kernel(%arg0: i32, %arg1: memref<512x16xf32, #tpu.memory_space<vmem>>, %arg2: memref<4x16xf32, #tpu.memory_space<vmem>>, %arg3: memref<1x4xf32, #tpu.memory_space<vmem>>, %arg4: memref<1x4xf32, #tpu.memory_space<vmem>>, %arg5: memref<1x1xf32, #tpu.memory_space<vmem>>, %arg6: memref<1x512xf32, #tpu.memory_space<vmem>>) attributes {dimension_semantics = [#tpu.dimension_semantics<parallel>], iteration_bounds = array<i64: 2>, scalar_prefetch = 0 : i64, scratch_operands = 0 : i64, tpu.core_type = #tpu.core_type<tc>, window_params = [{transform_indices = @transform_0, window_bounds = array<i64: 512, 16>}, {pipeline_mode = #tpu.pipeline_mode<synchronous>, transform_indices = @transform_1, window_bounds = array<i64: 4, 16>}, {pipeline_mode = #tpu.pipeline_mode<synchronous>, transform_indices = @transform_2, window_bounds = array<i64: 1, 4>}, {pipeline_mode = #tpu.pipeline_mode<synchronous>, transform_indices = @transform_3, window_bounds = array<i64: 1, 4>}, {pipeline_mode = #tpu.pipeline_mode<synchronous>, transform_indices = @transform_4, window_bounds = array<i64: 1, 1>}, {transform_indices = @transform_5, window_bounds = array<i64: 1, 512>}]} {
    %c0 = arith.constant 0 : index
    %c0_0 = arith.constant 0 : index
    %0 = vector.load %arg1[%c0, %c0_0] : memref<512x16xf32, #tpu.memory_space<vmem>>, vector<512x16xf32>
    %c0_1 = arith.constant 0 : index
    %c0_2 = arith.constant 0 : index
    %1 = vector.load %arg2[%c0_1, %c0_2] : memref<4x16xf32, #tpu.memory_space<vmem>>, vector<4x16xf32>
    %cst = arith.constant dense<0.000000e+00> : vector<512x4xf32>
    %2 = tpu.matmul %0, %1, %cst {dimension_numbers = #tpu.dot_dimension_numbers<[1], [1], [0], [0], [0, 0, 1, 0], [], []>} : vector<512x16xf32>, vector<4x16xf32>, vector<512x4xf32> -> vector<512x4xf32>
    %c0_3 = arith.constant 0 : index
    %c0_4 = arith.constant 0 : index
    %3 = vector.load %arg3[%c0_3, %c0_4] : memref<1x4xf32, #tpu.memory_space<vmem>>, vector<1x4xf32>
    %4 = vector.broadcast %3 : vector<1x4xf32> to vector<512x4xf32>
    %5 = arith.addf %2, %4 : vector<512x4xf32>
    %cst_5 = arith.constant 0.000000e+00 : f32
    %6 = vector.broadcast %cst_5 : f32 to vector<512x4xf32>
    %7 = arith.maximumf %5, %6 : vector<512x4xf32>
    %c0_6 = arith.constant 0 : index
    %c0_7 = arith.constant 0 : index
    %8 = vector.load %arg4[%c0_6, %c0_7] : memref<1x4xf32, #tpu.memory_space<vmem>>, vector<1x4xf32>
    %cst_8 = arith.constant dense<0.000000e+00> : vector<1x512xf32>
    %9 = tpu.matmul %8, %7, %cst_8 {dimension_numbers = #tpu.dot_dimension_numbers<[1], [1], [0], [0], [0, 0, 1, 0], [], []>} : vector<1x4xf32>, vector<512x4xf32>, vector<1x512xf32> -> vector<1x512xf32>
    %c0_9 = arith.constant 0 : index
    %c0_10 = arith.constant 0 : index
    %10 = vector.load %arg5[%c0_9, %c0_10] : memref<1x1xf32, #tpu.memory_space<vmem>>, vector<1x1xf32>
    %11 = vector.broadcast %10 : vector<1x1xf32> to vector<1x512xf32>
    %12 = arith.addf %9, %11 : vector<1x512xf32>
    %c0_11 = arith.constant 0 : index
    %c0_12 = arith.constant 0 : index
    %13 = vector.load %arg6[%c0_11, %c0_12] : memref<1x512xf32, #tpu.memory_space<vmem>>, vector<1x512xf32>
    tpu.vector_store %arg6[%c0_11, %c0_12], %12 {strides = array<i32>} : memref<1x512xf32, #tpu.memory_space<vmem>>, vector<1x512xf32>,
    return
  }
  func.func @transform_0(%arg0: i32) -> (i32, i32) {
    %c0_i32 = arith.constant 0 : i32
    %c0_i32_0 = arith.constant 0 : i32
    return %arg0, %c0_i32 : i32, i32
  }
  func.func @transform_1(%arg0: i32) -> (i32, i32) {
    %c0_i32 = arith.constant 0 : i32
    %c0_i32_0 = arith.constant 0 : i32
    %c0_i32_1 = arith.constant 0 : i32
    return %c0_i32, %c0_i32_0 : i32, i32
  }
  func.func @transform_2(%arg0: i32) -> (i32, i32) {
    %c0_i32 = arith.constant 0 : i32
    %c0_i32_0 = arith.constant 0 : i32
    %c0_i32_1 = arith.constant 0 : i32
    return %c0_i32, %c0_i32_0 : i32, i32
  }
  func.func @transform_3(%arg0: i32) -> (i32, i32) {
    %c0_i32 = arith.constant 0 : i32
    %c0_i32_0 = arith.constant 0 : i32
    %c0_i32_1 = arith.constant 0 : i32
    return %c0_i32, %c0_i32_0 : i32, i32
  }
  func.func @transform_4(%arg0: i32) -> (i32, i32) {
    %c0_i32 = arith.constant 0 : i32
    %c0_i32_0 = arith.constant 0 : i32
    %c0_i32_1 = arith.constant 0 : i32
    return %c0_i32, %c0_i32_0 : i32, i32
  }
  func.func @transform_5(%arg0: i32) -> (i32, i32) {
    %c0_i32 = arith.constant 0 : i32
    %c0_i32_0 = arith.constant 0 : i32
    return %c0_i32, %arg0 : i32, i32
  }
}

</mosaic_0001>

<llo_original>
// kernel: tpu_custom_call.1
$region0: #{tpu_custom_call.1}
  #allocation0 [shape = 'u32[]', space=smem, size = 0x4, offset = 0x4, fixed_abs, tag = 'smem constant byte address 0x4 - core index']
  #allocation1 [shape = 'u32[144,128]{1,0:T(1,128)}', space=vmem, size = 0x12000, scoped, tag = 'internal scratch']
  #allocation2 [shape = 'f32[1,1]{1,0:T(1,128)S(1)}', space=vmem, size = 0x200, scoped, tag = 'scoped memory for tpu_custom_call.1']
  %s0 = inlined_call_operand.vmem [shape: f32[1024,16], index: 0, kind: input, shape index: {}]
  %s1 = inlined_call_operand.vmem [shape: f32[4,16], index: 1, kind: input, shape index: {}]
  %s2 = inlined_call_operand.vmem [shape: f32[1,4], index: 2, kind: input, shape index: {}]
  %s3 = inlined_call_operand.vmem [shape: f32[1,4], index: 3, kind: input, shape index: {}]
  %s4 = inlined_call_operand.<no memory space> [shape: f32[1,1], index: 4, kind: input, shape index: {}]
  %s5 = inlined_call_operand.hbm [shape: f32[1,1024], index: 5, kind: output, shape index: {}]
  %s6 = sld [smem:[#allocation0]]
  $region53: #{tpu_custom_call.1} parent=0
    _
  %s8 = ssub.s32 1, %s6
  %s9 = scalar_select 0, %s8, %s6
  %v10 = vstv %s4
  %11 = vst [vmem:[#allocation2] sm:$0x1] %v10
  $region1: #{tpu_custom_call.1} parent=0
    #allocation3 [shape = 'u8[4096]{0}', space=vmem, size = 0x1000, scoped, tag = 'output window, operand 0']
    #allocation4 [shape = 's32[2]{0}', space=sflag, size = 0x8, scoped, tag = 'scoped memory for tpu_custom_call.1']
    %12 = vsyncpa [#allocation4], 0
    %s13 = scalar_lea.sflag [#allocation4], 1
    %14 = vsyncpa %s13, 0
    loop: start=0, step=1, limit=4
    $region2: #{tpu_custom_call.1} parent=1 // loop_pre_header
      _
    $region3: #{tpu_custom_call.1} parent=1 // loop_header
      %s16 = sphi 0, %s20
      %p17 = scmp.ge.s32.totalorder %s16, 4
      %s26 = sphi 0, %s28
      %s29 = sphi 0, %s26
      %s30 = sphi 0, %s29
      %s46 = sphi 0, %s30
      %s50 = sphi 0, %s50
      %s52 = sphi 0, %s50
      %s53 = sphi 0, %s52
      %s67 = sphi 0, %s53
      %s71 = sphi 0, %s71
      %s73 = sphi 0, %s71
      %s74 = sphi 0, %s73
      %s88 = sphi 0, %s74
      %s92 = sphi 0, %s92
      %s94 = sphi 0, %s92
      %s95 = sphi 0, %s94
      %s109 = sphi 0, %s95
      %s113 = sphi 0, %s113
      %s115 = sphi 0, %s113
      %s116 = sphi 0, %s115
      %s130 = sphi 0, %s116
      %s136 = sphi 0, %s138
      %s139 = sphi 0, %s136
      %s140 = sphi 0, %s139
      %s156 = sphi 0, %s140
    $region4: #{tpu_custom_call.1} parent=1 // loop_header_branch
      %19 = sbr.rel (%p17) target = $region8
    $region5: #{tpu_custom_call.1} parent=1 // loop_body
      %s21 = ssub.s32 %s16, 1
      %s22 = ssub.s32 %s16, 2
      %s23 = sadd.s32 %s16, 1
      %s24 = ssub.s32 %s16, %s23
      %p25 = scmp.eq.s32.totalorder %s24, 0
      %s27 = sadd.s32 %s26, 1
      %s28 = scalar_select %p25, %s26, %s27
      %p31 = pneg %p25
      %p32 = scmp.eq.s32.totalorder %s16, 1
      %p33 = por %p31, %p32
      %p34 = scmp.ne.s32.totalorder %s26, %s29
      %p35 = scmp.eq.s32.totalorder %s16, 0
      %p36 = por %p34, %p35
      %p37 = scmp.ne.s32.totalorder %s26, %s29
      %p38 = scmp.eq.s32.totalorder %s21, 1
      %p39 = por %p37, %p38
      %p40 = scmp.ne.s32.totalorder %s29, %s30
      %p41 = scmp.eq.s32.totalorder %s21, 0
      %p42 = por %p40, %p41
      %p43 = scmp.ne.s32.totalorder %s29, %s30
      %p44 = scmp.eq.s32.totalorder %s22, 1
      %p45 = por %p43, %p44
      %p47 = scmp.ne.s32.totalorder %s30, %s46
      %p48 = scmp.eq.s32.totalorder %s22, 0
      %p49 = por %p47, %p48
      %s51 = sadd.s32 %s50, 1
      %p54 = scmp.eq.s32.totalorder %s16, 1
      %p55 = scmp.ne.s32.totalorder %s50, %s52
      %p56 = scmp.eq.s32.totalorder %s16, 0
      %p57 = por %p55, %p56
      %p58 = scmp.ne.s32.totalorder %s50, %s52
      %p59 = scmp.eq.s32.totalorder %s21, 1
      %p60 = por %p58, %p59
      %p61 = scmp.ne.s32.totalorder %s52, %s53
      %p62 = scmp.eq.s32.totalorder %s21, 0
      %p63 = por %p61, %p62
      %p64 = scmp.ne.s32.totalorder %s52, %s53
      %p65 = scmp.eq.s32.totalorder %s22, 1
      %p66 = por %p64, %p65
      %p68 = scmp.ne.s32.totalorder %s53, %s67
      %p69 = scmp.eq.s32.totalorder %s22, 0
      %p70 = por %p68, %p69
      %s72 = sadd.s32 %s71, 1
      %p75 = scmp.eq.s32.totalorder %s16, 1
      %p76 = scmp.ne.s32.totalorder %s71, %s73
      %p77 = scmp.eq.s32.totalorder %s16, 0
      %p78 = por %p76, %p77
      %p79 = scmp.ne.s32.totalorder %s71, %s73
      %p80 = scmp.eq.s32.totalorder %s21, 1
      %p81 = por %p79, %p80
      %p82 = scmp.ne.s32.totalorder %s73, %s74
      %p83 = scmp.eq.s32.totalorder %s21, 0
      %p84 = por %p82, %p83
      %p85 = scmp.ne.s32.totalorder %s73, %s74
      %p86 = scmp.eq.s32.totalorder %s22, 1
      %p87 = por %p85, %p86
      %p89 = scmp.ne.s32.totalorder %s74, %s88
      %p90 = scmp.eq.s32.totalorder %s22, 0
      %p91 = por %p89, %p90
      %s93 = sadd.s32 %s92, 1
      %p96 = scmp.eq.s32.totalorder %s16, 1
      %p97 = scmp.ne.s32.totalorder %s92, %s94
      %p98 = scmp.eq.s32.totalorder %s16, 0
      %p99 = por %p97, %p98
      %p100 = scmp.ne.s32.totalorder %s92, %s94
      %p101 = scmp.eq.s32.totalorder %s21, 1
      %p102 = por %p100, %p101
      %p103 = scmp.ne.s32.totalorder %s94, %s95
      %p104 = scmp.eq.s32.totalorder %s21, 0
      %p105 = por %p103, %p104
      %p106 = scmp.ne.s32.totalorder %s94, %s95
      %p107 = scmp.eq.s32.totalorder %s22, 1
      %p108 = por %p106, %p107
      %p110 = scmp.ne.s32.totalorder %s95, %s109
      %p111 = scmp.eq.s32.totalorder %s22, 0
      %p112 = por %p110, %p111
      %s114 = sadd.s32 %s113, 1
      %p117 = scmp.eq.s32.totalorder %s16, 1
      %p118 = scmp.ne.s32.totalorder %s113, %s115
      %p119 = scmp.eq.s32.totalorder %s16, 0
      %p120 = por %p118, %p119
      %p121 = scmp.ne.s32.totalorder %s113, %s115
      %p122 = scmp.eq.s32.totalorder %s21, 1
      %p123 = por %p121, %p122
      %p124 = scmp.ne.s32.totalorder %s115, %s116
      %p125 = scmp.eq.s32.totalorder %s21, 0
      %p126 = por %p124, %p125
      %p127 = scmp.ne.s32.totalorder %s115, %s116
      %p128 = scmp.eq.s32.totalorder %s22, 1
      %p129 = por %p127, %p128
      %p131 = scmp.ne.s32.totalorder %s116, %s130
      %p132 = scmp.eq.s32.totalorder %s22, 0
      %p133 = por %p131, %p132
      %s134 = ssub.s32 %s16, %s23
      %p135 = scmp.eq.s32.totalorder %s134, 0
      %s137 = sadd.s32 %s136, 1
      %s138 = scalar_select %p135, %s136, %s137
      %p141 = pneg %p135
      %p142 = scmp.eq.s32.totalorder %s16, 1
      %p143 = por %p141, %p142
      %p144 = scmp.ne.s32.totalorder %s136, %s139
      %p145 = scmp.eq.s32.totalorder %s16, 0
      %p146 = por %p144, %p145
      %p147 = scmp.ne.s32.totalorder %s136, %s139
      %p148 = scmp.eq.s32.totalorder %s21, 1
      %p149 = por %p147, %p148
      %p150 = scmp.ne.s32.totalorder %s139, %s140
      %p151 = scmp.eq.s32.totalorder %s21, 0
      %p152 = por %p150, %p151
      %p153 = scmp.ne.s32.totalorder %s139, %s140
      %p154 = scmp.eq.s32.totalorder %s22, 1
      %p155 = por %p153, %p154
      %p157 = scmp.ne.s32.totalorder %s140, %s156
      %p158 = scmp.eq.s32.totalorder %s22, 0
      %p159 = por %p157, %p158
      %p160 = scmp.le.s32.totalorder 1, %s16
      %p161 = scmp.lt.s32.totalorder %s16, 3
      %p162 = pnand %p160, %p161
      %p163 = pneg %p162
      // Predicated region
      $region9: #{tpu_custom_call.1} parent=5 // pred_check
        _
      $region10: #{tpu_custom_call.1} parent=5 // pred_check_branch
        %165 = sbr.rel (%p162) target = $region12
      $region11: #{tpu_custom_call.1} parent=5 // pred_region
        %s166 = ssub.s32 %s16, 1
        // Predicated region
        $region13: #{tpu_custom_call.1} parent=11 // pred_check
          %p167 = pneg %p63
        $region14: #{tpu_custom_call.1} parent=11 // pred_check_branch
          %169 = sbr.rel (%p167) target = $region16
        $region15: #{tpu_custom_call.1} parent=11 // pred_region
          _
        $region16: #{tpu_custom_call.1} parent=11 // pred_fallthru
          _
        // Predicated region
        $region17: #{tpu_custom_call.1} parent=11 // pred_check
          %p170 = pneg %p84
        $region18: #{tpu_custom_call.1} parent=11 // pred_check_branch
          %172 = sbr.rel (%p170) target = $region20
        $region19: #{tpu_custom_call.1} parent=11 // pred_region
          _
        $region20: #{tpu_custom_call.1} parent=11 // pred_fallthru
          _
        // Predicated region
        $region21: #{tpu_custom_call.1} parent=11 // pred_check
          %p173 = pneg %p105
        $region22: #{tpu_custom_call.1} parent=11 // pred_check_branch
          %175 = sbr.rel (%p173) target = $region24
        $region23: #{tpu_custom_call.1} parent=11 // pred_region
          _
        $region24: #{tpu_custom_call.1} parent=11 // pred_fallthru
          _
        // Predicated region
        $region25: #{tpu_custom_call.1} parent=11 // pred_check
          %p176 = pneg %p126
        $region26: #{tpu_custom_call.1} parent=11 // pred_check_branch
          %178 = sbr.rel (%p176) target = $region28
        $region27: #{tpu_custom_call.1} parent=11 // pred_region
          _
        $region28: #{tpu_custom_call.1} parent=11 // pred_fallthru
          _
      $region12: #{tpu_custom_call.1} parent=5 // pred_fallthru
        _
      %p179 = scmp.lt.s32.totalorder %s16, 2
      // Predicated region
      $region29: #{tpu_custom_call.1} parent=5 // pred_check
        %p180 = pneg %p179
      $region30: #{tpu_custom_call.1} parent=5 // pred_check_branch
        %182 = sbr.rel (%p180) target = $region32
      $region31: #{tpu_custom_call.1} parent=5 // pred_region
        // Predicated region
        $region33: #{tpu_custom_call.1} parent=31 // pred_check
          %p183 = pneg %p36
        $region34: #{tpu_custom_call.1} parent=31 // pred_check_branch
          %185 = sbr.rel (%p183) target = $region36
        $region35: #{tpu_custom_call.1} parent=31 // pred_region
          %s186 = smul.u32 64, %s16
          %p187 = scmp.lt.s32.totalorder %s186, 127
          %s188 = scalar_select %p187, %s186, 127
          %s189 = smul.addr %s188, 8
          %s190 = scalar_lea.vmem %s0, %s189
          %s191 = smul.u32 64, %s16
        $region36: #{tpu_custom_call.1} parent=31 // pred_fallthru
          _
      $region32: #{tpu_custom_call.1} parent=5 // pred_fallthru
        _
      %p192 = scmp.le.s32.totalorder 1, %s16
      %p193 = scmp.lt.s32.totalorder %s16, 3
      %p194 = pnand %p192, %p193
      %p195 = pneg %p194
      // Predicated region
      $region37: #{tpu_custom_call.1} parent=5 // pred_check
        _
      $region38: #{tpu_custom_call.1} parent=5 // pred_check_branch
        %197 = sbr.rel (%p194) target = $region40
      $region39: #{tpu_custom_call.1} parent=5 // pred_region
        %s198 = ssub.s32 %s16, 1
        %s199 = smul.u32 64, %s21
        %p200 = scmp.lt.s32.totalorder %s199, 127
        %s201 = scalar_select %p200, %s199, 127
        %s202 = smul.addr %s201, 8
        %s203 = scalar_lea.vmem %s0, %s202
        %p204 = pneg %p42
        %p205 = pneg %p39
        %p206 = pneg %p63
        %p207 = pneg %p60
        %p208 = pneg %p84
        %p209 = pneg %p81
        %p210 = pneg %p105
        %p211 = pneg %p102
        %p212 = pneg %p126
        %p213 = pneg %p123
        %p214 = pneg %p152
        %p215 = pneg %p149
        %s216 = sand.u32 %s139, 1
        %s217 = scalar_lea.sflag [#allocation4], %s216
        %s218 = sand.u32 %s139, 1
        %s219 = smul.addr %s218, 4
        %s220 = scalar_lea.vmem [#allocation3], %s219
        %s221 = smul.u32 64, %s21
        %p222 = scmp.lt.s32.totalorder %s221, 127
        %s223 = scalar_select %p222, %s221, 127
        %s224 = smul.addr %s223, 8
        %s225 = scalar_lea.vmem %s0, %s224
        %s226 = smul.u32 64, %s21
        %s227 = smul.u32 4, %s21
        %v228 = vld [vmem:[%s225] sm:$0xff]
        %v229 = vld [vmem:[%s225 + $0x8] sm:$0xff]
        %v230 = vld [vmem:[%s225 + $0x10] sm:$0xff]
        %v231 = vld [vmem:[%s225 + $0x18] sm:$0xff]
        %v232 = vld [vmem:[%s225 + $0x20] sm:$0xff]
        %v233 = vld [vmem:[%s225 + $0x28] sm:$0xff]
        %v234 = vld [vmem:[%s225 + $0x30] sm:$0xff]
        %v235 = vld [vmem:[%s225 + $0x38] sm:$0xff]
        %v236 = vld [vmem:[%s225 + $0x40] sm:$0xff]
        %v237 = vld [vmem:[%s225 + $0x48] sm:$0xff]
        %v238 = vld [vmem:[%s225 + $0x50] sm:$0xff]
        %v239 = vld [vmem:[%s225 + $0x58] sm:$0xff]
        %v240 = vld [vmem:[%s225 + $0x60] sm:$0xff]
        %v241 = vld [vmem:[%s225 + $0x68] sm:$0xff]
        %v242 = vld [vmem:[%s225 + $0x70] sm:$0xff]
        %v243 = vld [vmem:[%s225 + $0x78] sm:$0xff]
        %v244 = vld [vmem:[%s225 + $0x80] sm:$0xff]
        %v245 = vld [vmem:[%s225 + $0x88] sm:$0xff]
        %v246 = vld [vmem:[%s225 + $0x90] sm:$0xff]
        %v247 = vld [vmem:[%s225 + $0x98] sm:$0xff]
        %v248 = vld [vmem:[%s225 + $0xa0] sm:$0xff]
        %v249 = vld [vmem:[%s225 + $0xa8] sm:$0xff]
        %v250 = vld [vmem:[%s225 + $0xb0] sm:$0xff]
        %v251 = vld [vmem:[%s225 + $0xb8] sm:$0xff]
        %v252 = vld [vmem:[%s225 + $0xc0] sm:$0xff]
        %v253 = vld [vmem:[%s225 + $0xc8] sm:$0xff]
        %v254 = vld [vmem:[%s225 + $0xd0] sm:$0xff]
        %v255 = vld [vmem:[%s225 + $0xd8] sm:$0xff]
        %v256 = vld [vmem:[%s225 + $0xe0] sm:$0xff]
        %v257 = vld [vmem:[%s225 + $0xe8] sm:$0xff]
        %v258 = vld [vmem:[%s225 + $0xf0] sm:$0xff]
        %v259 = vld [vmem:[%s225 + $0xf8] sm:$0xff]
        %v260 = vld [vmem:[%s225 + $0x100] sm:$0xff]
        %v261 = vld [vmem:[%s225 + $0x108] sm:$0xff]
        %v262 = vld [vmem:[%s225 + $0x110] sm:$0xff]
        %v263 = vld [vmem:[%s225 + $0x118] sm:$0xff]
        %v264 = vld [vmem:[%s225 + $0x120] sm:$0xff]
        %v265 = vld [vmem:[%s225 + $0x128] sm:$0xff]
        %v266 = vld [vmem:[%s225 + $0x130] sm:$0xff]
        %v267 = vld [vmem:[%s225 + $0x138] sm:$0xff]
        %v268 = vld [vmem:[%s225 + $0x140] sm:$0xff]
        %v269 = vld [vmem:[%s225 + $0x148] sm:$0xff]
        %v270 = vld [vmem:[%s225 + $0x150] sm:$0xff]
        %v271 = vld [vmem:[%s225 + $0x158] sm:$0xff]
        %v272 = vld [vmem:[%s225 + $0x160] sm:$0xff]
        %v273 = vld [vmem:[%s225 + $0x168] sm:$0xff]
        %v274 = vld [vmem:[%s225 + $0x170] sm:$0xff]
        %v275 = vld [vmem:[%s225 + $0x178] sm:$0xff]
        %v276 = vld [vmem:[%s225 + $0x180] sm:$0xff]
        %v277 = vld [vmem:[%s225 + $0x188] sm:$0xff]
        %v278 = vld [vmem:[%s225 + $0x190] sm:$0xff]
        %v279 = vld [vmem:[%s225 + $0x198] sm:$0xff]
        %v280 = vld [vmem:[%s225 + $0x1a0] sm:$0xff]
        %v281 = vld [vmem:[%s225 + $0x1a8] sm:$0xff]
        %v282 = vld [vmem:[%s225 + $0x1b0] sm:$0xff]
        %v283 = vld [vmem:[%s225 + $0x1b8] sm:$0xff]
        %v284 = vld [vmem:[%s225 + $0x1c0] sm:$0xff]
        %v285 = vld [vmem:[%s225 + $0x1c8] sm:$0xff]
        %v286 = vld [vmem:[%s225 + $0x1d0] sm:$0xff]
        %v287 = vld [vmem:[%s225 + $0x1d8] sm:$0xff]
        %v288 = vld [vmem:[%s225 + $0x1e0] sm:$0xff]
        %v289 = vld [vmem:[%s225 + $0x1e8] sm:$0xff]
        %v290 = vld [vmem:[%s225 + $0x1f0] sm:$0xff]
        %v291 = vld [vmem:[%s225 + $0x1f8] sm:$0xff]
        %v292 = vld [vmem:[%s1] sm:$0xf]
        %v293 = vld [vmem:[%s2] sm:$0x1]
        %v295 = vlaneseq
        %v296 = vshrl.u32 %v295, 7
        %v297 = vsub.s32 0, %v296
        %v298 = vrot.slane %v293, %v297
        %vm300 = vcmask 130048
        %v302 = vsel %vm300, %v228, 0
        %v305 = vsel %vm300, %v229, 0
        %v308 = vsel %vm300, %v230, 0
        %v311 = vsel %vm300, %v231, 0
        %v314 = vsel %vm300, %v232, 0
        %v317 = vsel %vm300, %v233, 0
        %v320 = vsel %vm300, %v234, 0
        %v323 = vsel %vm300, %v235, 0
        %v326 = vsel %vm300, %v236, 0
        %v329 = vsel %vm300, %v237, 0
        %v332 = vsel %vm300, %v238, 0
        %v335 = vsel %vm300, %v239, 0
        %v338 = vsel %vm300, %v240, 0
        %v341 = vsel %vm300, %v241, 0
        %v344 = vsel %vm300, %v242, 0
        %v347 = vsel %vm300, %v243, 0
        %v350 = vsel %vm300, %v244, 0
        %v353 = vsel %vm300, %v245, 0
        %v356 = vsel %vm300, %v246, 0
        %v359 = vsel %vm300, %v247, 0
        %v362 = vsel %vm300, %v248, 0
        %v365 = vsel %vm300, %v249, 0
        %v368 = vsel %vm300, %v250, 0
        %v371 = vsel %vm300, %v251, 0
        %v374 = vsel %vm300, %v252, 0
        %v377 = vsel %vm300, %v253, 0
        %v380 = vsel %vm300, %v254, 0
        %v383 = vsel %vm300, %v255, 0
        %v386 = vsel %vm300, %v256, 0
        %v389 = vsel %vm300, %v257, 0
        %v392 = vsel %vm300, %v258, 0
        %v395 = vsel %vm300, %v259, 0
        %v398 = vsel %vm300, %v260, 0
        %v401 = vsel %vm300, %v261, 0
        %v404 = vsel %vm300, %v262, 0
        %v407 = vsel %vm300, %v263, 0
        %v410 = vsel %vm300, %v264, 0
        %v413 = vsel %vm300, %v265, 0
        %v416 = vsel %vm300, %v266, 0
        %v419 = vsel %vm300, %v267, 0
        %v422 = vsel %vm300, %v268, 0
        %v425 = vsel %vm300, %v269, 0
        %v428 = vsel %vm300, %v270, 0
        %v431 = vsel %vm300, %v271, 0
        %v434 = vsel %vm300, %v272, 0
        %v437 = vsel %vm300, %v273, 0
        %v440 = vsel %vm300, %v274, 0
        %v443 = vsel %vm300, %v275, 0
        %v446 = vsel %vm300, %v276, 0
        %v449 = vsel %vm300, %v277, 0
        %v452 = vsel %vm300, %v278, 0
        %v455 = vsel %vm300, %v279, 0
        %v458 = vsel %vm300, %v280, 0
        %v461 = vsel %vm300, %v281, 0
        %v464 = vsel %vm300, %v282, 0
        %v467 = vsel %vm300, %v283, 0
        %v470 = vsel %vm300, %v284, 0
        %v473 = vsel %vm300, %v285, 0
        %v476 = vsel %vm300, %v286, 0
        %v479 = vsel %vm300, %v287, 0
        %v482 = vsel %vm300, %v288, 0
        %v485 = vsel %vm300, %v289, 0
        %v488 = vsel %vm300, %v290, 0
        %v491 = vsel %vm300, %v291, 0
        %v494 = vsel %vm300, %v292, 0
        %496 = vmatprep.subr.mxu0 0.0
        %497 = vmatpush1.xpose.msra.mxu0 0.0
        %498 = vmatprep.subr.mxu0 0.0
        %499 = vmatpush1.xpose.msra.mxu0 0.0
        %500 = vmatprep.subr.mxu0 0.0
        %501 = vmatpush1.xpose.msra.mxu0 0.0
        %502 = vmatprep.subr.mxu0 0.0
        %503 = vmatpush1.xpose.msra.mxu0 0.0
        %504 = vmatprep.subr.mxu0 0.0
        %505 = vmatpush1.xpose.msra.mxu0 0.0
        %506 = vmatprep.subr.mxu0 0.0
        %507 = vmatpush1.xpose.msra.mxu0 0.0
        %508 = vmatprep.subr.mxu0 0.0
        %509 = vmatpush1.xpose.msra.mxu0 0.0
        %510 = vmatprep.subr.mxu0 0.0
        %511 = vmatpush1.xpose.msra.mxu0 0.0
        %512 = vmatprep.subr.mxu0 0.0
        %513 = vmatpush1.xpose.msra.mxu0 0.0
        %514 = vmatprep.subr.mxu0 0.0
        %515 = vmatpush1.xpose.msra.mxu0 0.0
        %516 = vmatprep.subr.mxu0 0.0
        %517 = vmatpush1.xpose.msra.mxu0 0.0
        %518 = vmatprep.subr.mxu0 0.0
        %519 = vmatpush1.xpose.msra.mxu0 0.0
        %520 = vmatprep.subr.mxu0 0.0
        %521 = vmatpush1.xpose.msra.mxu0 0.0
        %522 = vmatprep.subr.mxu0 0.0
        %523 = vmatpush1.xpose.msra.mxu0 0.0
        %524 = vmatprep.subr.mxu0 0.0
        %525 = vmatpush1.xpose.msra.mxu0 0.0
        %526 = vmatprep.subr.mxu0 0.0
        %527 = vmatpush1.xpose.msra.mxu0 %v494
        %528 = vmatprep.subr.mxu0 0.0
        %529 = vmatpush2.xpose.msra.mxu0 0.0
        %530 = vmatprep.subr.mxu0 0.0
        %531 = vmatpush2.xpose.msra.mxu0 0.0
        %532 = vmatprep.subr.mxu0 0.0
        %533 = vmatpush2.xpose.msra.mxu0 0.0
        %534 = vmatprep.subr.mxu0 0.0
        %535 = vmatpush2.xpose.msra.mxu0 0.0
        %536 = vmatprep.subr.mxu0 0.0
        %537 = vmatpush2.xpose.msra.mxu0 0.0
        %538 = vmatprep.subr.mxu0 0.0
        %539 = vmatpush2.xpose.msra.mxu0 0.0
        %540 = vmatprep.subr.mxu0 0.0
        %541 = vmatpush2.xpose.msra.mxu0 0.0
        %542 = vmatprep.subr.mxu0 0.0
        %543 = vmatpush2.xpose.msra.mxu0 0.0
        %544 = vmatprep.subr.mxu0 0.0
        %545 = vmatpush2.xpose.msra.mxu0 0.0
        %546 = vmatprep.subr.mxu0 0.0
        %547 = vmatpush2.xpose.msra.mxu0 0.0
        %548 = vmatprep.subr.mxu0 0.0
        %549 = vmatpush2.xpose.msra.mxu0 0.0
        %550 = vmatprep.subr.mxu0 0.0
        %551 = vmatpush2.xpose.msra.mxu0 0.0
        %552 = vmatprep.subr.mxu0 0.0
        %553 = vmatpush2.xpose.msra.mxu0 0.0
        %554 = vmatprep.subr.mxu0 0.0
        %555 = vmatpush2.xpose.msra.mxu0 0.0
        %556 = vmatprep.subr.mxu0 0.0
        %557 = vmatpush2.xpose.msra.mxu0 0.0
        %558 = vmatprep.subr.mxu0 0.0
        %559 = vmatpush2.xpose.msra.mxu0 0.0
        %560 = vmatprep.mubr.f32.mxu0 0.0
        %561 = vmatmul.mubr.f32.gmra.mxu0 %v302
        %v562 = vpop.f32.mrf.mxu0
        %v563 = vadd.f32 %v298, %v562
        %v564 = vpop.f32.mrf.mxu0
        %565 = vmatprep.mubr.f32.mxu0 0.0
        %566 = vmatmul.mubr.f32.gmra.mxu0 %v305
        %v567 = vpop.f32.mrf.mxu0
        %v568 = vadd.f32 %v298, %v567
        %v569 = vpop.f32.mrf.mxu0
        %570 = vmatprep.mubr.f32.mxu0 0.0
        %571 = vmatmul.mubr.f32.gmra.mxu0 %v308
        %v572 = vpop.f32.mrf.mxu0
        %v573 = vadd.f32 %v298, %v572
        %v574 = vpop.f32.mrf.mxu0
        %575 = vmatprep.mubr.f32.mxu0 0.0
        %576 = vmatmul.mubr.f32.gmra.mxu0 %v311
        %v577 = vpop.f32.mrf.mxu0
        %v578 = vadd.f32 %v298, %v577
        %v579 = vpop.f32.mrf.mxu0
        %580 = vmatprep.mubr.f32.mxu0 0.0
        %581 = vmatmul.mubr.f32.gmra.mxu0 %v314
        %v582 = vpop.f32.mrf.mxu0
        %v583 = vadd.f32 %v298, %v582
        %v584 = vpop.f32.mrf.mxu0
        %585 = vmatprep.mubr.f32.mxu0 0.0
        %586 = vmatmul.mubr.f32.gmra.mxu0 %v317
        %v587 = vpop.f32.mrf.mxu0
        %v588 = vadd.f32 %v298, %v587
        %v589 = vpop.f32.mrf.mxu0
        %590 = vmatprep.mubr.f32.mxu0 0.0
        %591 = vmatmul.mubr.f32.gmra.mxu0 %v320
        %v592 = vpop.f32.mrf.mxu0
        %v593 = vadd.f32 %v298, %v592
        %v594 = vpop.f32.mrf.mxu0
        %595 = vmatprep.mubr.f32.mxu0 0.0
        %596 = vmatmul.mubr.f32.gmra.mxu0 %v323
        %v597 = vpop.f32.mrf.mxu0
        %v598 = vadd.f32 %v298, %v597
        %v599 = vpop.f32.mrf.mxu0
        %600 = vmatprep.mubr.f32.mxu0 0.0
        %601 = vmatmul.mubr.f32.gmra.mxu0 %v326
        %v602 = vpop.f32.mrf.mxu0
        %v603 = vadd.f32 %v298, %v602
        %v604 = vpop.f32.mrf.mxu0
        %605 = vmatprep.mubr.f32.mxu0 0.0
        %606 = vmatmul.mubr.f32.gmra.mxu0 %v329
        %v607 = vpop.f32.mrf.mxu0
        %v608 = vadd.f32 %v298, %v607
        %v609 = vpop.f32.mrf.mxu0
        %610 = vmatprep.mubr.f32.mxu0 0.0
        %611 = vmatmul.mubr.f32.gmra.mxu0 %v332
        %v612 = vpop.f32.mrf.mxu0
        %v613 = vadd.f32 %v298, %v612
        %v614 = vpop.f32.mrf.mxu0
        %615 = vmatprep.mubr.f32.mxu0 0.0
        %616 = vmatmul.mubr.f32.gmra.mxu0 %v335
        %v617 = vpop.f32.mrf.mxu0
        %v618 = vadd.f32 %v298, %v617
        %v619 = vpop.f32.mrf.mxu0
        %620 = vmatprep.mubr.f32.mxu0 0.0
        %621 = vmatmul.mubr.f32.gmra.mxu0 %v338
        %v622 = vpop.f32.mrf.mxu0
        %v623 = vadd.f32 %v298, %v622
        %v624 = vpop.f32.mrf.mxu0
        %625 = vmatprep.mubr.f32.mxu0 0.0
        %626 = vmatmul.mubr.f32.gmra.mxu0 %v341
        %v627 = vpop.f32.mrf.mxu0
        %v628 = vadd.f32 %v298, %v627
        %v629 = vpop.f32.mrf.mxu0
        %630 = vmatprep.mubr.f32.mxu0 0.0
        %631 = vmatmul.mubr.f32.gmra.mxu0 %v344
        %v632 = vpop.f32.mrf.mxu0
        %v633 = vadd.f32 %v298, %v632
        %v634 = vpop.f32.mrf.mxu0
        %635 = vmatprep.mubr.f32.mxu0 0.0
        %636 = vmatmul.mubr.f32.gmra.mxu0 %v347
        %v637 = vpop.f32.mrf.mxu0
        %v638 = vadd.f32 %v298, %v637
        %v639 = vpop.f32.mrf.mxu0
        %640 = vmatprep.mubr.f32.mxu0 0.0
        %641 = vmatmul.mubr.f32.gmra.mxu0 %v350
        %v642 = vpop.f32.mrf.mxu0
        %v643 = vadd.f32 %v298, %v642
        %v644 = vpop.f32.mrf.mxu0
        %645 = vmatprep.mubr.f32.mxu0 0.0
        %646 = vmatmul.mubr.f32.gmra.mxu0 %v353
        %v647 = vpop.f32.mrf.mxu0
        %v648 = vadd.f32 %v298, %v647
        %v649 = vpop.f32.mrf.mxu0
        %650 = vmatprep.mubr.f32.mxu0 0.0
        %651 = vmatmul.mubr.f32.gmra.mxu0 %v356
        %v652 = vpop.f32.mrf.mxu0
        %v653 = vadd.f32 %v298, %v652
        %v654 = vpop.f32.mrf.mxu0
        %655 = vmatprep.mubr.f32.mxu0 0.0
        %656 = vmatmul.mubr.f32.gmra.mxu0 %v359
        %v657 = vpop.f32.mrf.mxu0
        %v658 = vadd.f32 %v298, %v657
        %v659 = vpop.f32.mrf.mxu0
        %660 = vmatprep.mubr.f32.mxu0 0.0
        %661 = vmatmul.mubr.f32.gmra.mxu0 %v362
        %v662 = vpop.f32.mrf.mxu0
        %v663 = vadd.f32 %v298, %v662
        %v664 = vpop.f32.mrf.mxu0
        %665 = vmatprep.mubr.f32.mxu0 0.0
        %666 = vmatmul.mubr.f32.gmra.mxu0 %v365
        %v667 = vpop.f32.mrf.mxu0
        %v668 = vadd.f32 %v298, %v667
        %v669 = vpop.f32.mrf.mxu0
        %670 = vmatprep.mubr.f32.mxu0 0.0
        %671 = vmatmul.mubr.f32.gmra.mxu0 %v368
        %v672 = vpop.f32.mrf.mxu0
        %v673 = vadd.f32 %v298, %v672
        %v674 = vpop.f32.mrf.mxu0
        %675 = vmatprep.mubr.f32.mxu0 0.0
        %676 = vmatmul.mubr.f32.gmra.mxu0 %v371
        %v677 = vpop.f32.mrf.mxu0
        %v678 = vadd.f32 %v298, %v677
        %v679 = vpop.f32.mrf.mxu0
        %680 = vmatprep.mubr.f32.mxu0 0.0
        %681 = vmatmul.mubr.f32.gmra.mxu0 %v374
        %v682 = vpop.f32.mrf.mxu0
        %v683 = vadd.f32 %v298, %v682
        %v684 = vpop.f32.mrf.mxu0
        %685 = vmatprep.mubr.f32.mxu0 0.0
        %686 = vmatmul.mubr.f32.gmra.mxu0 %v377
        %v687 = vpop.f32.mrf.mxu0
        %v688 = vadd.f32 %v298, %v687
        %v689 = vpop.f32.mrf.mxu0
        %690 = vmatprep.mubr.f32.mxu0 0.0
        %691 = vmatmul.mubr.f32.gmra.mxu0 %v380
        %v692 = vpop.f32.mrf.mxu0
        %v693 = vadd.f32 %v298, %v692
        %v694 = vpop.f32.mrf.mxu0
        %695 = vmatprep.mubr.f32.mxu0 0.0
        %696 = vmatmul.mubr.f32.gmra.mxu0 %v383
        %v697 = vpop.f32.mrf.mxu0
        %v698 = vadd.f32 %v298, %v697
        %v699 = vpop.f32.mrf.mxu0
        %700 = vmatprep.mubr.f32.mxu0 0.0
        %701 = vmatmul.mubr.f32.gmra.mxu0 %v386
        %v702 = vpop.f32.mrf.mxu0
        %v703 = vadd.f32 %v298, %v702
        %v704 = vpop.f32.mrf.mxu0
        %705 = vmatprep.mubr.f32.mxu0 0.0
        %706 = vmatmul.mubr.f32.gmra.mxu0 %v389
        %v707 = vpop.f32.mrf.mxu0
        %v708 = vadd.f32 %v298, %v707
        %v709 = vpop.f32.mrf.mxu0
        %710 = vmatprep.mubr.f32.mxu0 0.0
        %711 = vmatmul.mubr.f32.gmra.mxu0 %v392
        %v712 = vpop.f32.mrf.mxu0
        %v713 = vadd.f32 %v298, %v712
        %v714 = vpop.f32.mrf.mxu0
        %715 = vmatprep.mubr.f32.mxu0 0.0
        %716 = vmatmul.mubr.f32.gmra.mxu0 %v395
        %v717 = vpop.f32.mrf.mxu0
        %v718 = vadd.f32 %v298, %v717
        %v719 = vpop.f32.mrf.mxu0
        %720 = vmatprep.mubr.f32.mxu0 0.0
        %721 = vmatmul.mubr.f32.gmra.mxu0 %v398
        %v722 = vpop.f32.mrf.mxu0
        %v723 = vadd.f32 %v298, %v722
        %v724 = vpop.f32.mrf.mxu0
        %725 = vmatprep.mubr.f32.mxu0 0.0
        %726 = vmatmul.mubr.f32.gmra.mxu0 %v401
        %v727 = vpop.f32.mrf.mxu0
        %v728 = vadd.f32 %v298, %v727
        %v729 = vpop.f32.mrf.mxu0
        %730 = vmatprep.mubr.f32.mxu0 0.0
        %731 = vmatmul.mubr.f32.gmra.mxu0 %v404
        %v732 = vpop.f32.mrf.mxu0
        %v733 = vadd.f32 %v298, %v732
        %v734 = vpop.f32.mrf.mxu0
        %735 = vmatprep.mubr.f32.mxu0 0.0
        %736 = vmatmul.mubr.f32.gmra.mxu0 %v407
        %v737 = vpop.f32.mrf.mxu0
        %v738 = vadd.f32 %v298, %v737
        %v739 = vpop.f32.mrf.mxu0
        %740 = vmatprep.mubr.f32.mxu0 0.0
        %741 = vmatmul.mubr.f32.gmra.mxu0 %v410
        %v742 = vpop.f32.mrf.mxu0
        %v743 = vadd.f32 %v298, %v742
        %v744 = vpop.f32.mrf.mxu0
        %745 = vmatprep.mubr.f32.mxu0 0.0
        %746 = vmatmul.mubr.f32.gmra.mxu0 %v413
        %v747 = vpop.f32.mrf.mxu0
        %v748 = vadd.f32 %v298, %v747
        %v749 = vpop.f32.mrf.mxu0
        %750 = vmatprep.mubr.f32.mxu0 0.0
        %751 = vmatmul.mubr.f32.gmra.mxu0 %v416
        %v752 = vpop.f32.mrf.mxu0
        %v753 = vadd.f32 %v298, %v752
        %v754 = vpop.f32.mrf.mxu0
        %755 = vmatprep.mubr.f32.mxu0 0.0
        %756 = vmatmul.mubr.f32.gmra.mxu0 %v419
        %v757 = vpop.f32.mrf.mxu0
        %v758 = vadd.f32 %v298, %v757
        %v759 = vpop.f32.mrf.mxu0
        %760 = vmatprep.mubr.f32.mxu0 0.0
        %761 = vmatmul.mubr.f32.gmra.mxu0 %v422
        %v762 = vpop.f32.mrf.mxu0
        %v763 = vadd.f32 %v298, %v762
        %v764 = vpop.f32.mrf.mxu0
        %765 = vmatprep.mubr.f32.mxu0 0.0
        %766 = vmatmul.mubr.f32.gmra.mxu0 %v425
        %v767 = vpop.f32.mrf.mxu0
        %v768 = vadd.f32 %v298, %v767
        %v769 = vpop.f32.mrf.mxu0
        %770 = vmatprep.mubr.f32.mxu0 0.0
        %771 = vmatmul.mubr.f32.gmra.mxu0 %v428
        %v772 = vpop.f32.mrf.mxu0
        %v773 = vadd.f32 %v298, %v772
        %v774 = vpop.f32.mrf.mxu0
        %775 = vmatprep.mubr.f32.mxu0 0.0
        %776 = vmatmul.mubr.f32.gmra.mxu0 %v431
        %v777 = vpop.f32.mrf.mxu0
        %v778 = vadd.f32 %v298, %v777
        %v779 = vpop.f32.mrf.mxu0
        %780 = vmatprep.mubr.f32.mxu0 0.0
        %781 = vmatmul.mubr.f32.gmra.mxu0 %v434
        %v782 = vpop.f32.mrf.mxu0
        %v783 = vadd.f32 %v298, %v782
        %v784 = vpop.f32.mrf.mxu0
        %785 = vmatprep.mubr.f32.mxu0 0.0
        %786 = vmatmul.mubr.f32.gmra.mxu0 %v437
        %v787 = vpop.f32.mrf.mxu0
        %v788 = vadd.f32 %v298, %v787
        %v789 = vpop.f32.mrf.mxu0
        %790 = vmatprep.mubr.f32.mxu0 0.0
        %791 = vmatmul.mubr.f32.gmra.mxu0 %v440
        %v792 = vpop.f32.mrf.mxu0
        %v793 = vadd.f32 %v298, %v792
        %v794 = vpop.f32.mrf.mxu0
        %795 = vmatprep.mubr.f32.mxu0 0.0
        %796 = vmatmul.mubr.f32.gmra.mxu0 %v443
        %v797 = vpop.f32.mrf.mxu0
        %v798 = vadd.f32 %v298, %v797
        %v799 = vpop.f32.mrf.mxu0
        %800 = vmatprep.mubr.f32.mxu0 0.0
        %801 = vmatmul.mubr.f32.gmra.mxu0 %v446
        %v802 = vpop.f32.mrf.mxu0
        %v803 = vadd.f32 %v298, %v802
        %v804 = vpop.f32.mrf.mxu0
        %805 = vmatprep.mubr.f32.mxu0 0.0
        %806 = vmatmul.mubr.f32.gmra.mxu0 %v449
        %v807 = vpop.f32.mrf.mxu0
        %v808 = vadd.f32 %v298, %v807
        %v809 = vpop.f32.mrf.mxu0
        %810 = vmatprep.mubr.f32.mxu0 0.0
        %811 = vmatmul.mubr.f32.gmra.mxu0 %v452
        %v812 = vpop.f32.mrf.mxu0
        %v813 = vadd.f32 %v298, %v812
        %v814 = vpop.f32.mrf.mxu0
        %815 = vmatprep.mubr.f32.mxu0 0.0
        %816 = vmatmul.mubr.f32.gmra.mxu0 %v455
        %v817 = vpop.f32.mrf.mxu0
        %v818 = vadd.f32 %v298, %v817
        %v819 = vpop.f32.mrf.mxu0
        %820 = vmatprep.mubr.f32.mxu0 0.0
        %821 = vmatmul.mubr.f32.gmra.mxu0 %v458
        %v822 = vpop.f32.mrf.mxu0
        %v823 = vadd.f32 %v298, %v822
        %v824 = vpop.f32.mrf.mxu0
        %825 = vmatprep.mubr.f32.mxu0 0.0
        %826 = vmatmul.mubr.f32.gmra.mxu0 %v461
        %v827 = vpop.f32.mrf.mxu0
        %v828 = vadd.f32 %v298, %v827
        %v829 = vpop.f32.mrf.mxu0
        %830 = vmatprep.mubr.f32.mxu0 0.0
        %831 = vmatmul.mubr.f32.gmra.mxu0 %v464
        %v832 = vpop.f32.mrf.mxu0
        %v833 = vadd.f32 %v298, %v832
        %v834 = vpop.f32.mrf.mxu0
        %835 = vmatprep.mubr.f32.mxu0 0.0
        %836 = vmatmul.mubr.f32.gmra.mxu0 %v467
        %v837 = vpop.f32.mrf.mxu0
        %v838 = vadd.f32 %v298, %v837
        %v839 = vpop.f32.mrf.mxu0
        %840 = vmatprep.mubr.f32.mxu0 0.0
        %841 = vmatmul.mubr.f32.gmra.mxu0 %v470
        %v842 = vpop.f32.mrf.mxu0
        %v843 = vadd.f32 %v298, %v842
        %v844 = vpop.f32.mrf.mxu0
        %845 = vmatprep.mubr.f32.mxu0 0.0
        %846 = vmatmul.mubr.f32.gmra.mxu0 %v473
        %v847 = vpop.f32.mrf.mxu0
        %v848 = vadd.f32 %v298, %v847
        %v849 = vpop.f32.mrf.mxu0
        %850 = vmatprep.mubr.f32.mxu0 0.0
        %851 = vmatmul.mubr.f32.gmra.mxu0 %v476
        %v852 = vpop.f32.mrf.mxu0
        %v853 = vadd.f32 %v298, %v852
        %v854 = vpop.f32.mrf.mxu0
        %855 = vmatprep.mubr.f32.mxu0 0.0
        %856 = vmatmul.mubr.f32.gmra.mxu0 %v479
        %v857 = vpop.f32.mrf.mxu0
        %v858 = vadd.f32 %v298, %v857
        %v859 = vpop.f32.mrf.mxu0
        %860 = vmatprep.mubr.f32.mxu0 0.0
        %861 = vmatmul.mubr.f32.gmra.mxu0 %v482
        %v862 = vpop.f32.mrf.mxu0
        %v863 = vadd.f32 %v298, %v862
        %v864 = vpop.f32.mrf.mxu0
        %865 = vmatprep.mubr.f32.mxu0 0.0
        %866 = vmatmul.mubr.f32.gmra.mxu0 %v485
        %v867 = vpop.f32.mrf.mxu0
        %v868 = vadd.f32 %v298, %v867
        %v869 = vpop.f32.mrf.mxu0
        %870 = vmatprep.mubr.f32.mxu0 0.0
        %871 = vmatmul.mubr.f32.gmra.mxu0 %v488
        %v872 = vpop.f32.mrf.mxu0
        %v873 = vadd.f32 %v298, %v872
        %v874 = vpop.f32.mrf.mxu0
        %875 = vmatprep.mubr.f32.mxu0 0.0
        %876 = vmatmul.mubr.f32.gmra.mxu0 %v491
        %v877 = vpop.f32.mrf.mxu0
        %v878 = vadd.f32 %v298, %v877
        %v879 = vpop.f32.mrf.mxu0
        %880 = vdwg.mxu0
        %v881 = vmax.f32 %v563, 0.0
        %v882 = vmax.f32 %v568, 0.0
        %v883 = vmax.f32 %v573, 0.0
        %v884 = vmax.f32 %v578, 0.0
        %v885 = vmax.f32 %v583, 0.0
        %v886 = vmax.f32 %v588, 0.0
        %v887 = vmax.f32 %v593, 0.0
        %v888 = vmax.f32 %v598, 0.0
        %v889 = vmax.f32 %v603, 0.0
        %v890 = vmax.f32 %v608, 0.0
        %v891 = vmax.f32 %v613, 0.0
        %v892 = vmax.f32 %v618, 0.0
        %v893 = vmax.f32 %v623, 0.0
        %v894 = vmax.f32 %v628, 0.0
        %v895 = vmax.f32 %v633, 0.0
        %v896 = vmax.f32 %v638, 0.0
        %v897 = vmax.f32 %v643, 0.0
        %v898 = vmax.f32 %v648, 0.0
        %v899 = vmax.f32 %v653, 0.0
        %v900 = vmax.f32 %v658, 0.0
        %v901 = vmax.f32 %v663, 0.0
        %v902 = vmax.f32 %v668, 0.0
        %v903 = vmax.f32 %v673, 0.0
        %v904 = vmax.f32 %v678, 0.0
        %v905 = vmax.f32 %v683, 0.0
        %v906 = vmax.f32 %v688, 0.0
        %v907 = vmax.f32 %v693, 0.0
        %v908 = vmax.f32 %v698, 0.0
        %v909 = vmax.f32 %v703, 0.0
        %v910 = vmax.f32 %v708, 0.0
        %v911 = vmax.f32 %v713, 0.0
        %v912 = vmax.f32 %v718, 0.0
        %v913 = vmax.f32 %v723, 0.0
        %v914 = vmax.f32 %v728, 0.0
        %v915 = vmax.f32 %v733, 0.0
        %v916 = vmax.f32 %v738, 0.0
        %v917 = vmax.f32 %v743, 0.0
        %v918 = vmax.f32 %v748, 0.0
        %v919 = vmax.f32 %v753, 0.0
        %v920 = vmax.f32 %v758, 0.0
        %v921 = vmax.f32 %v763, 0.0
        %v922 = vmax.f32 %v768, 0.0
        %v923 = vmax.f32 %v773, 0.0
        %v924 = vmax.f32 %v778, 0.0
        %v925 = vmax.f32 %v783, 0.0
        %v926 = vmax.f32 %v788, 0.0
        %v927 = vmax.f32 %v793, 0.0
        %v928 = vmax.f32 %v798, 0.0
        %v929 = vmax.f32 %v803, 0.0
        %v930 = vmax.f32 %v808, 0.0
        %v931 = vmax.f32 %v813, 0.0
        %v932 = vmax.f32 %v818, 0.0
        %v933 = vmax.f32 %v823, 0.0
        %v934 = vmax.f32 %v828, 0.0
        %v935 = vmax.f32 %v833, 0.0
        %v936 = vmax.f32 %v838, 0.0
        %v937 = vmax.f32 %v843, 0.0
        %v938 = vmax.f32 %v848, 0.0
        %v939 = vmax.f32 %v853, 0.0
        %v940 = vmax.f32 %v858, 0.0
        %v941 = vmax.f32 %v863, 0.0
        %v942 = vmax.f32 %v868, 0.0
        %v943 = vmax.f32 %v873, 0.0
        %v944 = vmax.f32 %v878, 0.0
        %v945 = vld [vmem:[%s3] sm:$0x1]
        %v946 = vld [vmem:[#allocation2] sm:$0x1]
        %948 = vset.pattern.permute.xlu0 0
        %949 = vperm.xlu0 %948, %v946
        %v950 = vpop.permute.xlu0 %949
        %v952 = vlaneseq
        %v953 = vshrl.u32 %v952, 7
        %v954 = vsub.s32 0, %v953
        %v955 = vrot.slane %v950, %v954
        %vm956 = vcmask 31744
        %v958 = vsel %vm956, %v945, 0
        %v961 = vsel %vm956, %v881, 0
        %v964 = vsel %vm956, %v882, 0
        %v967 = vsel %vm956, %v883, 0
        %v970 = vsel %vm956, %v884, 0
        %v973 = vsel %vm956, %v885, 0
        %v976 = vsel %vm956, %v886, 0
        %v979 = vsel %vm956, %v887, 0
        %v982 = vsel %vm956, %v888, 0
        %v985 = vsel %vm956, %v889, 0
        %v988 = vsel %vm956, %v890, 0
        %v991 = vsel %vm956, %v891, 0
        %v994 = vsel %vm956, %v892, 0
        %v997 = vsel %vm956, %v893, 0
        %v1000 = vsel %vm956, %v894, 0
        %v1003 = vsel %vm956, %v895, 0
        %v1006 = vsel %vm956, %v896, 0
        %v1009 = vsel %vm956, %v897, 0
        %v1012 = vsel %vm956, %v898, 0
        %v1015 = vsel %vm956, %v899, 0
        %v1018 = vsel %vm956, %v900, 0
        %v1021 = vsel %vm956, %v901, 0
        %v1024 = vsel %vm956, %v902, 0
        %v1027 = vsel %vm956, %v903, 0
        %v1030 = vsel %vm956, %v904, 0
        %v1033 = vsel %vm956, %v905, 0
        %v1036 = vsel %vm956, %v906, 0
        %v1039 = vsel %vm956, %v907, 0
        %v1042 = vsel %vm956, %v908, 0
        %v1045 = vsel %vm956, %v909, 0
        %v1048 = vsel %vm956, %v910, 0
        %v1051 = vsel %vm956, %v911, 0
        %v1054 = vsel %vm956, %v912, 0
        %v1057 = vsel %vm956, %v913, 0
        %v1060 = vsel %vm956, %v914, 0
        %v1063 = vsel %vm956, %v915, 0
        %v1066 = vsel %vm956, %v916, 0
        %v1069 = vsel %vm956, %v917, 0
        %v1072 = vsel %vm956, %v918, 0
        %v1075 = vsel %vm956, %v919, 0
        %v1078 = vsel %vm956, %v920, 0
        %v1081 = vsel %vm956, %v921, 0
        %v1084 = vsel %vm956, %v922, 0
        %v1087 = vsel %vm956, %v923, 0
        %v1090 = vsel %vm956, %v924, 0
        %v1093 = vsel %vm956, %v925, 0
        %v1096 = vsel %vm956, %v926, 0
        %v1099 = vsel %vm956, %v927, 0
        %v1102 = vsel %vm956, %v928, 0
        %v1105 = vsel %vm956, %v929, 0
        %v1108 = vsel %vm956, %v930, 0
        %v1111 = vsel %vm956, %v931, 0
        %v1114 = vsel %vm956, %v932, 0
        %v1117 = vsel %vm956, %v933, 0
        %v1120 = vsel %vm956, %v934, 0
        %v1123 = vsel %vm956, %v935, 0
        %v1126 = vsel %vm956, %v936, 0
        %v1129 = vsel %vm956, %v937, 0
        %v1132 = vsel %vm956, %v938, 0
        %v1135 = vsel %vm956, %v939, 0
        %v1138 = vsel %vm956, %v940, 0
        %v1141 = vsel %vm956, %v941, 0
        %v1144 = vsel %vm956, %v942, 0
        %v1147 = vsel %vm956, %v943, 0
        %v1150 = vsel %vm956, %v944, 0
        %1152 = vmatprep.subr.mxu0 0.0
        %1153 = vmatpush1.xpose.msra.mxu0 %v1006
        %1154 = vmatprep.subr.mxu0 0.0
        %1155 = vmatpush1.xpose.msra.mxu0 %v1003
        %1156 = vmatprep.subr.mxu0 0.0
        %1157 = vmatpush1.xpose.msra.mxu0 %v1000
        %1158 = vmatprep.subr.mxu0 0.0
        %1159 = vmatpush1.xpose.msra.mxu0 %v997
        %1160 = vmatprep.subr.mxu0 0.0
        %1161 = vmatpush1.xpose.msra.mxu0 %v994
        %1162 = vmatprep.subr.mxu0 0.0
        %1163 = vmatpush1.xpose.msra.mxu0 %v991
        %1164 = vmatprep.subr.mxu0 0.0
        %1165 = vmatpush1.xpose.msra.mxu0 %v988
        %1166 = vmatprep.subr.mxu0 0.0
        %1167 = vmatpush1.xpose.msra.mxu0 %v985
        %1168 = vmatprep.subr.mxu0 0.0
        %1169 = vmatpush1.xpose.msra.mxu0 %v982
        %1170 = vmatprep.subr.mxu0 0.0
        %1171 = vmatpush1.xpose.msra.mxu0 %v979
        %1172 = vmatprep.subr.mxu0 0.0
        %1173 = vmatpush1.xpose.msra.mxu0 %v976
        %1174 = vmatprep.subr.mxu0 0.0
        %1175 = vmatpush1.xpose.msra.mxu0 %v973
        %1176 = vmatprep.subr.mxu0 0.0
        %1177 = vmatpush1.xpose.msra.mxu0 %v970
        %1178 = vmatprep.subr.mxu0 0.0
        %1179 = vmatpush1.xpose.msra.mxu0 %v967
        %1180 = vmatprep.subr.mxu0 0.0
        %1181 = vmatpush1.xpose.msra.mxu0 %v964
        %1182 = vmatprep.subr.mxu0 0.0
        %1183 = vmatpush1.xpose.msra.mxu0 %v961
        %1184 = vmatprep.subr.mxu0 0.0
        %1185 = vmatpush2.xpose.msra.mxu0 %v1054
        %1186 = vmatprep.subr.mxu0 0.0
        %1187 = vmatpush2.xpose.msra.mxu0 %v1051
        %1188 = vmatprep.subr.mxu0 0.0
        %1189 = vmatpush2.xpose.msra.mxu0 %v1048
        %1190 = vmatprep.subr.mxu0 0.0
        %1191 = vmatpush2.xpose.msra.mxu0 %v1045
        %1192 = vmatprep.subr.mxu0 0.0
        %1193 = vmatpush2.xpose.msra.mxu0 %v1042
        %1194 = vmatprep.subr.mxu0 0.0
        %1195 = vmatpush2.xpose.msra.mxu0 %v1039
        %1196 = vmatprep.subr.mxu0 0.0
        %1197 = vmatpush2.xpose.msra.mxu0 %v1036
        %1198 = vmatprep.subr.mxu0 0.0
        %1199 = vmatpush2.xpose.msra.mxu0 %v1033
        %1200 = vmatprep.subr.mxu0 0.0
        %1201 = vmatpush2.xpose.msra.mxu0 %v1030
        %1202 = vmatprep.subr.mxu0 0.0
        %1203 = vmatpush2.xpose.msra.mxu0 %v1027
        %1204 = vmatprep.subr.mxu0 0.0
        %1205 = vmatpush2.xpose.msra.mxu0 %v1024
        %1206 = vmatprep.subr.mxu0 0.0
        %1207 = vmatpush2.xpose.msra.mxu0 %v1021
        %1208 = vmatprep.subr.mxu0 0.0
        %1209 = vmatpush2.xpose.msra.mxu0 %v1018
        %1210 = vmatprep.subr.mxu0 0.0
        %1211 = vmatpush2.xpose.msra.mxu0 %v1015
        %1212 = vmatprep.subr.mxu0 0.0
        %1213 = vmatpush2.xpose.msra.mxu0 %v1012
        %1214 = vmatprep.subr.mxu0 0.0
        %1215 = vmatpush2.xpose.msra.mxu0 %v1009
        %1216 = vmatprep.mubr.f32.mxu0 0.0
        %1217 = vmatmul.mubr.f32.gmra.mxu0 %v958
        %v1218 = vpop.f32.mrf.mxu0
        %v1219 = vadd.f32 %v955, %v1218
        %v1220 = vpop.f32.mrf.mxu0
        %v1221 = vadd.f32 %v955, %v1220
        %1222 = vdwg.mxu0
        %1223 = vmatprep.subr.mxu0 0.0
        %1224 = vmatpush1.xpose.msra.mxu0 %v1102
        %1225 = vmatprep.subr.mxu0 0.0
        %1226 = vmatpush1.xpose.msra.mxu0 %v1099
        %1227 = vmatprep.subr.mxu0 0.0
        %1228 = vmatpush1.xpose.msra.mxu0 %v1096
        %1229 = vmatprep.subr.mxu0 0.0
        %1230 = vmatpush1.xpose.msra.mxu0 %v1093
        %1231 = vmatprep.subr.mxu0 0.0
        %1232 = vmatpush1.xpose.msra.mxu0 %v1090
        %1233 = vmatprep.subr.mxu0 0.0
        %1234 = vmatpush1.xpose.msra.mxu0 %v1087
        %1235 = vmatprep.subr.mxu0 0.0
        %1236 = vmatpush1.xpose.msra.mxu0 %v1084
        %1237 = vmatprep.subr.mxu0 0.0
        %1238 = vmatpush1.xpose.msra.mxu0 %v1081
        %1239 = vmatprep.subr.mxu0 0.0
        %1240 = vmatpush1.xpose.msra.mxu0 %v1078
        %1241 = vmatprep.subr.mxu0 0.0
        %1242 = vmatpush1.xpose.msra.mxu0 %v1075
        %1243 = vmatprep.subr.mxu0 0.0
        %1244 = vmatpush1.xpose.msra.mxu0 %v1072
        %1245 = vmatprep.subr.mxu0 0.0
        %1246 = vmatpush1.xpose.msra.mxu0 %v1069
        %1247 = vmatprep.subr.mxu0 0.0
        %1248 = vmatpush1.xpose.msra.mxu0 %v1066
        %1249 = vmatprep.subr.mxu0 0.0
        %1250 = vmatpush1.xpose.msra.mxu0 %v1063
        %1251 = vmatprep.subr.mxu0 0.0
        %1252 = vmatpush1.xpose.msra.mxu0 %v1060
        %1253 = vmatprep.subr.mxu0 0.0
        %1254 = vmatpush1.xpose.msra.mxu0 %v1057
        %1255 = vmatprep.subr.mxu0 0.0
        %1256 = vmatpush2.xpose.msra.mxu0 %v1150
        %1257 = vmatprep.subr.mxu0 0.0
        %1258 = vmatpush2.xpose.msra.mxu0 %v1147
        %1259 = vmatprep.subr.mxu0 0.0
        %1260 = vmatpush2.xpose.msra.mxu0 %v1144
        %1261 = vmatprep.subr.mxu0 0.0
        %1262 = vmatpush2.xpose.msra.mxu0 %v1141
        %1263 = vmatprep.subr.mxu0 0.0
        %1264 = vmatpush2.xpose.msra.mxu0 %v1138
        %1265 = vmatprep.subr.mxu0 0.0
        %1266 = vmatpush2.xpose.msra.mxu0 %v1135
        %1267 = vmatprep.subr.mxu0 0.0
        %1268 = vmatpush2.xpose.msra.mxu0 %v1132
        %1269 = vmatprep.subr.mxu0 0.0
        %1270 = vmatpush2.xpose.msra.mxu0 %v1129
        %1271 = vmatprep.subr.mxu0 0.0
        %1272 = vmatpush2.xpose.msra.mxu0 %v1126
        %1273 = vmatprep.subr.mxu0 0.0
        %1274 = vmatpush2.xpose.msra.mxu0 %v1123
        %1275 = vmatprep.subr.mxu0 0.0
        %1276 = vmatpush2.xpose.msra.mxu0 %v1120
        %1277 = vmatprep.subr.mxu0 0.0
        %1278 = vmatpush2.xpose.msra.mxu0 %v1117
        %1279 = vmatprep.subr.mxu0 0.0
        %1280 = vmatpush2.xpose.msra.mxu0 %v1114
        %1281 = vmatprep.subr.mxu0 0.0
        %1282 = vmatpush2.xpose.msra.mxu0 %v1111
        %1283 = vmatprep.subr.mxu0 0.0
        %1284 = vmatpush2.xpose.msra.mxu0 %v1108
        %1285 = vmatprep.subr.mxu0 0.0
        %1286 = vmatpush2.xpose.msra.mxu0 %v1105
        %1287 = vmatprep.mubr.f32.mxu0 0.0
        %1288 = vmatmul.mubr.f32.gmra.mxu0 %v958
        %v1289 = vpop.f32.mrf.mxu0
        %v1290 = vadd.f32 %v955, %v1289
        %v1291 = vpop.f32.mrf.mxu0
        %v1292 = vadd.f32 %v955, %v1291
        %1293 = vdwg.mxu0
        %v1298 = vcombine.low %v1219, %v1221
        %v1299 = vcombine.low %v1290, %v1292
        %v1301 = vunpack.c.l.s4 1966171168
        %v1302 = vunpack.c.0.s8 %v1301
        %v1303 = vlaneseq
        %v1304 = vshrl.u32 %v1303, 7
        %v1305 = vsub.s32 %v1302, %v1304
        %v1306 = vrot.slane %v1298, %v1305
        %v1308 = vunpack.c.l.s4 1966171168
        %v1309 = vunpack.c.0.s8 %v1308
        %v1310 = vlaneseq
        %v1311 = vshrl.u32 %v1310, 7
        %v1312 = vsub.s32 %v1309, %v1311
        %v1313 = vrot.slane %v1299, %v1312
        %v1314 = vcombine.low %v1306, %v1313
        %v1316 = vunpack.c.l.s4 1966171168
        %v1317 = vunpack.c.0.s8 %v1316
        %v1318 = vlaneseq
        %v1319 = vshrl.u32 %v1318, 7
        %v1320 = vsub.s32 %v1317, %v1319
        %v1321 = vrot.slane %v1314, %v1320
        %v1323 = vlaneseq
        %vm1324 = vcmp.ge.s32.totalorder %v1323, 0
        %vm1325 = vcmp.lt.s32.totalorder %v1323, 512
        %vm1326 = vmand %vm1324, %vm1325
        %1327 = vst.msk [vmem:[%s220] sm:$0xf] %vm1326, %v1321
        %s1328 = sand.u32 %s139, 1
        %s1329 = scalar_lea.sflag [#allocation4], %s1328
        %s1330 = sand.u32 %s139, 1
        %s1331 = smul.addr %s1330, 4
        %s1332 = scalar_lea.vmem [#allocation3], %s1331
        // Predicated region
        $region41: #{tpu_custom_call.1} parent=39 // pred_check
          %p1333 = pneg %p149
        $region42: #{tpu_custom_call.1} parent=39 // pred_check_branch
          %1335 = sbr.rel (%p1333) target = $region44
        $region43: #{tpu_custom_call.1} parent=39 // pred_region
          %s1336 = smul.u32 4, %s21
          %s1338 = ssub.s32 64, 64
          %1339 = vsyncadd %s1329, %s1338
          %s1340 = smul.addr %s1336, 16
          %s1341 = scalar_lea.hbm %s5, %s1340
          %s1343 = sshll.u32 %s1332, 4
          %s1344 = int_to_ptr.vmem [resolvable:$true] %s1343
          %1346 = dma.vmem_to_hbm [thread:$0]  %s1344, 64, %s1341, %s1329
        $region44: #{tpu_custom_call.1} parent=39 // pred_fallthru
          _
      $region40: #{tpu_custom_call.1} parent=5 // pred_fallthru
        _
      %p1347 = scmp.le.s32.totalorder 2, %s16
      // Predicated region
      $region45: #{tpu_custom_call.1} parent=5 // pred_check
        %p1348 = pneg %p1347
      $region46: #{tpu_custom_call.1} parent=5 // pred_check_branch
        %1350 = sbr.rel (%p1348) target = $region48
      $region47: #{tpu_custom_call.1} parent=5 // pred_region
        %s1351 = ssub.s32 %s16, 2
        // Predicated region
        $region49: #{tpu_custom_call.1} parent=47 // pred_check
          %p1352 = pneg %p155
        $region50: #{tpu_custom_call.1} parent=47 // pred_check_branch
          %1354 = sbr.rel (%p1352) target = $region52
        $region51: #{tpu_custom_call.1} parent=47 // pred_region
          %s1355 = sand.u32 %s140, 1
          %s1356 = scalar_lea.sflag [#allocation4], %s1355
          %s1357 = sand.u32 %s140, 1
          %s1358 = smul.addr %s1357, 4
          %s1359 = scalar_lea.vmem [#allocation3], %s1358
          %1360 = dma.done %s1356, 64
        $region52: #{tpu_custom_call.1} parent=47 // pred_fallthru
          _
      $region48: #{tpu_custom_call.1} parent=5 // pred_fallthru
        _
    $region6: #{tpu_custom_call.1} parent=1 // loop_footer
      %s20 = sadd.s32 1, %s16
    $region7: #{tpu_custom_call.1} parent=1 // loop_footer_branch
      %15 = sbr.rel target = $region3
    $region8: #{tpu_custom_call.1} parent=1 // loop_exit
      _
    %1361 = vsyncpa [#allocation4], 1
    %s1362 = scalar_lea.sflag [#allocation4], 1
    %1363 = vsyncpa %s1362, 1

</llo_original>
